<compile_context>
chip_gen: v7x
topology: tpu7x:2x2x1
jax: 0.10.0
libtpu: 0.0.40
codegen_flags: <defaults>
</compile_context>

<pallas_src>
import functools

import jax
import jax.numpy as jnp
from jax import lax
from jax.experimental import pallas as pl
from jax.experimental.pallas import tpu as pltpu


def _conv_bn_relu_kernel(p_ref, w_ref, b_ref, o_ref, *, block_n):
    # p_ref: (block_n, K, Mp)    bf16 im2col patches (K = KH*KW*Cin, Mp = pad128(Ho*Wo))
    # w_ref: (Cout, K)           bf16 conv weight with BN scale pre-folded
    # b_ref: (Cout, 1)           f32 folded BN bias
    # o_ref: (block_n, Cout, Mp) bf16 output; Mp multiple of 128 -> unmasked lane-dense stores
    w = w_ref[...]
    b = b_ref[...]

    def body(i, carry):
        acc = jnp.dot(w, p_ref[i], preferred_element_type=jnp.float32)   # (Cout, Mp) f32 (MXU)
        o_ref[i] = jnp.maximum(acc + b, 0.0).astype(o_ref.dtype)
        return carry

    lax.fori_loop(0, block_n, body, 0, unroll=True)


def basic_conv2d(x_nchw, weight, gamma, beta, running_mean, running_var,
                 *, stride=1, padding=1, eps=1e-3, out_dtype=jnp.bfloat16):
    """Fused Conv2d(bias=False) + BatchNorm2d(eval) + ReLU.

    x_nchw: (N, Cin, H, W); weight: (Cout, Cin, KH, KW)  (PyTorch layouts).
    Returns (N, Cout, Ho, Wo) in `out_dtype` (default bf16), NCHW.
    """
    assert stride == 1, "kernel is specialized for stride=1"
    N, Cin, H, W = x_nchw.shape
    Cout, _, KH, KW = weight.shape
    Ho = H + 2 * padding - KH + 1
    Wo = W + 2 * padding - KW + 1
    K = KH * KW * Cin
    M = Ho * Wo
    Mp = ((M + 127) // 128) * 128                     # lane-dense output stores

    # ---- BN folding (inference mode) ----
    scale = (gamma / jnp.sqrt(running_var + eps)).astype(jnp.float32)    # (Cout,)
    bias = (beta - running_mean * scale).astype(jnp.float32)             # (Cout,)

    # weight OIHW -> (Cout, KH, KW, Cin) -> (Cout, K); BN scale folded; bf16 for the MXU.
    w_t = (jnp.transpose(weight, (0, 2, 3, 1)).reshape(Cout, K).astype(jnp.float32)
           * scale[:, None]).astype(jnp.bfloat16)
    b_col = bias.reshape(Cout, 1)

    # ---- im2col directly from NCHW, entirely in bf16 (no f32 intermediate) ----
    # patches[n, kh*KW*Cin + kw*Cin + ci, h*Wo + w] = x_padded[n, ci, h+kh, w+kw]
    xb = x_nchw.astype(jnp.bfloat16)
    xp = jnp.pad(xb, ((0, 0), (0, 0), (padding, padding), (padding, padding)))
    patches = jnp.concatenate(
        [xp[:, :, kh:kh + Ho, kw:kw + Wo].reshape(N, Cin, M)
         for kh in range(KH) for kw in range(KW)],
        axis=1)                                                           # (N, K, M) bf16

    # ---- choose images per grid step: amortize per-step overhead, keep >=2 steps for v7x ----
    bytes_per_img = 2 * (K * Mp + Cout * Mp)          # bf16 patches in + bf16 out
    block_n = max(1, min(N, (512 * 1024) // max(1, bytes_per_img)))
    while block_n > 1 and pl.cdiv(N, block_n) < 2:
        block_n -= 1
    Np = pl.cdiv(N, block_n) * block_n
    grid_n = Np // block_n

    if Np != N or Mp != M:
        patches = jnp.pad(patches, ((0, Np - N), (0, 0), (0, Mp - M)))    # (Np, K, Mp)

    flops = 2 * N * Cout * K * M
    bytes_accessed = (Np * K * Mp * 2 + Cout * K * 2 + Cout * 4 + Np * Cout * Mp * 2)
    cost = pl.CostEstimate(flops=flops, transcendentals=0,
                           bytes_accessed=bytes_accessed)

    kernel = functools.partial(_conv_bn_relu_kernel, block_n=block_n)

    out = pl.pallas_call(
        kernel,
        out_shape=jax.ShapeDtypeStruct((Np, Cout, Mp), out_dtype),
        grid_spec=pltpu.PrefetchScalarGridSpec(
            num_scalar_prefetch=0,
            grid=(grid_n,),
            in_specs=[
                pl.BlockSpec((block_n, K, Mp), lambda n: (n, 0, 0)),
                pl.BlockSpec((Cout, K), lambda n: (0, 0)),
                pl.BlockSpec((Cout, 1), lambda n: (0, 0)),
            ],
            out_specs=pl.BlockSpec((block_n, Cout, Mp), lambda n: (n, 0, 0)),
        ),
        compiler_params=pltpu.CompilerParams(
            dimension_semantics=("parallel",),        # v7x: grid steps shard across TCs
            vmem_limit_bytes=32 * 1024 * 1024),       # well under v7x's 64 MiB physical VMEM
        cost_estimate=cost,
    )(patches, w_t, b_col)

    # Crop batch/spatial padding; (N, Cout, Ho*Wo) -> (N, Cout, Ho, Wo), already NCHW.
    return out[:N, :, :M].reshape(N, Cout, Ho, Wo)


# ------------------------------ references --------------------------------- #

def _reference_f32(x, weight, gamma, beta, running_mean, running_var,
                   *, padding=1, eps=1e-3):
    """Pure-f32 conv -> BN(eval) -> ReLU, mirroring the PyTorch module."""
    y = jax.lax.conv_general_dilated(
        x.astype(jnp.float32), weight.astype(jnp.float32),
        (1, 1), [(padding, padding)] * 2,
        dimension_numbers=("NCHW", "OIHW", "NCHW"),
        precision=jax.lax.Precision.HIGHEST)
    scale = gamma / jnp.sqrt(running_var + eps)
    bias = beta - running_mean * scale
    return jnp.maximum(y * scale[None, :, None, None] + bias[None, :, None, None], 0.0)


def _reference_bf16_consistent(x, weight, gamma, beta, running_mean, running_var,
                               *, padding=1, eps=1e-3):
    """Reference applying the same bf16 rounding of the folded weight / input as the
    kernel (with f32 accumulation), for a tighter numerical check."""
    scale = gamma / jnp.sqrt(running_var + eps)
    bias = beta - running_mean * scale
    w_folded = (weight.astype(jnp.float32) * scale[:, None, None, None]
                ).astype(jnp.bfloat16).astype(jnp.float32)
    xq = x.astype(jnp.bfloat16).astype(jnp.float32)
    y = jax.lax.conv_general_dilated(
        xq, w_folded, (1, 1), [(padding, padding)] * 2,
        dimension_numbers=("NCHW", "OIHW", "NCHW"),
        precision=jax.lax.Precision.HIGHEST)
    return jnp.maximum(y + bias[None, :, None, None], 0.0)


if __name__ == "__main__":
    key = jax.random.PRNGKey(0)
    kx, kw, kg, kb, km, kv = jax.random.split(key, 6)

    N, Cin, H, W = 2, 4, 16, 16
    Cout, KH, KW = 8, 3, 3

    x = jax.random.normal(kx, (N, Cin, H, W), dtype=jnp.float32)
    # "kaiming-ish" conv weight (PyTorch OIHW layout), no bias.
    fan_in = Cin * KH * KW
    weight = jax.random.normal(kw, (Cout, Cin, KH, KW), dtype=jnp.float32) * (
        (2.0 / fan_in) ** 0.5)
    # BatchNorm parameters / running stats (inference mode).
    gamma = 1.0 + 0.1 * jax.random.normal(kg, (Cout,), dtype=jnp.float32)
    beta = 0.1 * jax.random.normal(kb, (Cout,), dtype=jnp.float32)
    running_mean = 0.1 * jax.random.normal(km, (Cout,), dtype=jnp.float32)
    running_var = jax.random.uniform(kv, (Cout,), minval=0.5, maxval=1.5,
                                     dtype=jnp.float32)

    out = basic_conv2d(x, weight, gamma, beta, running_mean, running_var)
    out = jax.block_until_ready(out)
    assert out.shape == (N, Cout, H, W)
    out_f32 = out.astype(jnp.float32)

    # Tight-ish check vs. a reference with identical bf16 weight/input rounding
    # (f32 accumulation); remaining delta is the bf16 output rounding of the kernel.
    ref_tight = _reference_bf16_consistent(x, weight, gamma, beta,
                                           running_mean, running_var)
    assert jnp.allclose(out_f32, ref_tight, atol=3e-2, rtol=3e-2), \
        "mismatch vs bf16-consistent reference"

    # Sanity check vs. the pure-f32 module semantics (loose: bf16 MXU inputs/outputs).
    ref_f32 = _reference_f32(x, weight, gamma, beta, running_mean, running_var)
    assert jnp.allclose(out_f32, ref_f32, atol=8e-2, rtol=8e-2), \
        "mismatch vs f32 reference"

    print("KERNEL_OK")
</pallas_src>

<mosaic_0001>
module attributes {stable_mosaic.version = 11 : i64} {
  func.func @_conv_bn_relu_kernel(%arg0: i32, %arg1: memref<1x36x256xbf16, #tpu.memory_space<vmem>>, %arg2: memref<8x36xbf16, #tpu.memory_space<vmem>>, %arg3: memref<8x1xf32, #tpu.memory_space<vmem>>, %arg4: memref<1x8x256xbf16, #tpu.memory_space<vmem>>) attributes {dimension_semantics = [#tpu.dimension_semantics<parallel>], iteration_bounds = array<i64: 2>, scalar_prefetch = 0 : i64, scratch_operands = 0 : i64, tpu.core_type = #tpu.core_type<tc>, window_params = [{transform_indices = @transform_0, window_bounds = array<i64: 1, 36, 256>}, {pipeline_mode = #tpu.pipeline_mode<synchronous>, transform_indices = @transform_1, window_bounds = array<i64: 8, 36>}, {pipeline_mode = #tpu.pipeline_mode<synchronous>, transform_indices = @transform_2, window_bounds = array<i64: 8, 1>}, {transform_indices = @transform_3, window_bounds = array<i64: 1, 8, 256>}]} {
    %c0 = arith.constant 0 : index
    %c0_0 = arith.constant 0 : index
    %0 = vector.load %arg2[%c0, %c0_0] : memref<8x36xbf16, #tpu.memory_space<vmem>>, vector<8x36xbf16>
    %c0_1 = arith.constant 0 : index
    %c0_2 = arith.constant 0 : index
    %1 = vector.load %arg3[%c0_1, %c0_2] : memref<8x1xf32, #tpu.memory_space<vmem>>, vector<8x1xf32>
    %c0_i32 = arith.constant 0 : i32
    %2 = arith.index_cast %c0_i32 : i32 to index
    %c0_3 = arith.constant 0 : index
    %c0_4 = arith.constant 0 : index
    %3 = vector.load %arg1[%2, %c0_3, %c0_4] : memref<1x36x256xbf16, #tpu.memory_space<vmem>>, vector<1x36x256xbf16>
    %4 = vector.shape_cast %3 : vector<1x36x256xbf16> to vector<36x256xbf16>
    %cst = arith.constant dense<0.000000e+00> : vector<8x256xf32>
    %5 = tpu.matmul %0, %4, %cst {dimension_numbers = #tpu.dot_dimension_numbers<[1], [0], [0], [1], [0, 0, 1, 1], [], []>} : vector<8x36xbf16>, vector<36x256xbf16>, vector<8x256xf32> -> vector<8x256xf32>
    %6 = vector.broadcast %1 : vector<8x1xf32> to vector<8x256xf32>
    %7 = arith.addf %5, %6 : vector<8x256xf32>
    %cst_5 = arith.constant 0.000000e+00 : f32
    %8 = vector.broadcast %cst_5 : f32 to vector<8x256xf32>
    %9 = arith.maximumf %7, %8 : vector<8x256xf32>
    %10 = arith.truncf %9 : vector<8x256xf32> to vector<8x256xbf16>
    %11 = arith.index_cast %c0_i32 : i32 to index
    %c0_6 = arith.constant 0 : index
    %c0_7 = arith.constant 0 : index
    %12 = vector.load %arg4[%11, %c0_6, %c0_7] : memref<1x8x256xbf16, #tpu.memory_space<vmem>>, vector<1x8x256xbf16>
    %13 = vector.shape_cast %12 : vector<1x8x256xbf16> to vector<8x256xbf16>
    %14 = vector.shape_cast %10 : vector<8x256xbf16> to vector<1x8x256xbf16>
    tpu.vector_store %arg4[%11, %c0_6, %c0_7], %14 {strides = array<i32>} : memref<1x8x256xbf16, #tpu.memory_space<vmem>>, vector<1x8x256xbf16>,
    %c1_i32 = arith.constant 1 : i32
    return
  }
  func.func @transform_0(%arg0: i32) -> (i32, i32, i32) {
    %c0_i32 = arith.constant 0 : i32
    %c0_i32_0 = arith.constant 0 : i32
    %c0_i32_1 = arith.constant 0 : i32
    return %arg0, %c0_i32, %c0_i32_0 : i32, i32, i32
  }
  func.func @transform_1(%arg0: i32) -> (i32, i32) {
    %c0_i32 = arith.constant 0 : i32
    %c0_i32_0 = arith.constant 0 : i32
    %c0_i32_1 = arith.constant 0 : i32
    return %c0_i32, %c0_i32_0 : i32, i32
  }
  func.func @transform_2(%arg0: i32) -> (i32, i32) {
    %c0_i32 = arith.constant 0 : i32
    %c0_i32_0 = arith.constant 0 : i32
    %c0_i32_1 = arith.constant 0 : i32
    return %c0_i32, %c0_i32_0 : i32, i32
  }
  func.func @transform_3(%arg0: i32) -> (i32, i32, i32) {
    %c0_i32 = arith.constant 0 : i32
    %c0_i32_0 = arith.constant 0 : i32
    %c0_i32_1 = arith.constant 0 : i32
    return %arg0, %c0_i32, %c0_i32_0 : i32, i32, i32
  }
}

</mosaic_0001>

<llo_original>
// kernel: tpu_custom_call.1
$region0: #{tpu_custom_call.1}
  #allocation0 [shape = 'u32[]', space=smem, size = 0x4, offset = 0x4, fixed_abs, tag = 'smem constant byte address 0x4 - core index']
  #allocation1 [shape = 'u32[144,128]{1,0:T(1,128)}', space=vmem, size = 0x12000, scoped, tag = 'internal scratch']
  %s0 = inlined_call_operand.vmem [shape: bf16[2,36,256], index: 0, kind: input, shape index: {}]
  %s1 = inlined_call_operand.vmem [shape: bf16[8,36], index: 1, kind: input, shape index: {}]
  %s2 = inlined_call_operand.vmem [shape: f32[8,1], index: 2, kind: input, shape index: {}]
  %s3 = inlined_call_operand.hbm [shape: bf16[2,8,256], index: 3, kind: output, shape index: {}]
  %s4 = sld [smem:[#allocation0]]
  $region45: #{tpu_custom_call.1} parent=0
    _
  %s6 = ssub.s32 1, %s4
  %s7 = scalar_select 0, %s6, %s4
  $region1: #{tpu_custom_call.1} parent=0
    #allocation2 [shape = 'u8[8192]{0}', space=vmem, size = 0x2000, scoped, tag = 'output window, operand 0']
    #allocation3 [shape = 's32[2]{0}', space=sflag, size = 0x8, scoped, tag = 'scoped memory for tpu_custom_call.1']
    %8 = vsyncpa [#allocation3], 0
    %s9 = scalar_lea.sflag [#allocation3], 1
    %10 = vsyncpa %s9, 0
    loop: start=0, step=1, limit=4
    $region2: #{tpu_custom_call.1} parent=1 // loop_pre_header
      _
    $region3: #{tpu_custom_call.1} parent=1 // loop_header
      %s12 = sphi 0, %s16
      %p13 = scmp.ge.s32.totalorder %s12, 4
      %s22 = sphi 0, %s24
      %s25 = sphi 0, %s22
      %s26 = sphi 0, %s25
      %s42 = sphi 0, %s26
      %s46 = sphi 0, %s46
      %s48 = sphi 0, %s46
      %s49 = sphi 0, %s48
      %s63 = sphi 0, %s49
      %s67 = sphi 0, %s67
      %s69 = sphi 0, %s67
      %s70 = sphi 0, %s69
      %s84 = sphi 0, %s70
      %s90 = sphi 0, %s92
      %s93 = sphi 0, %s90
      %s94 = sphi 0, %s93
      %s110 = sphi 0, %s94
    $region4: #{tpu_custom_call.1} parent=1 // loop_header_branch
      %15 = sbr.rel (%p13) target = $region8
    $region5: #{tpu_custom_call.1} parent=1 // loop_body
      %s17 = ssub.s32 %s12, 1
      %s18 = ssub.s32 %s12, 2
      %s19 = sadd.s32 %s12, 1
      %s20 = ssub.s32 %s12, %s19
      %p21 = scmp.eq.s32.totalorder %s20, 0
      %s23 = sadd.s32 %s22, 1
      %s24 = scalar_select %p21, %s22, %s23
      %p27 = pneg %p21
      %p28 = scmp.eq.s32.totalorder %s12, 1
      %p29 = por %p27, %p28
      %p30 = scmp.ne.s32.totalorder %s22, %s25
      %p31 = scmp.eq.s32.totalorder %s12, 0
      %p32 = por %p30, %p31
      %p33 = scmp.ne.s32.totalorder %s22, %s25
      %p34 = scmp.eq.s32.totalorder %s17, 1
      %p35 = por %p33, %p34
      %p36 = scmp.ne.s32.totalorder %s25, %s26
      %p37 = scmp.eq.s32.totalorder %s17, 0
      %p38 = por %p36, %p37
      %p39 = scmp.ne.s32.totalorder %s25, %s26
      %p40 = scmp.eq.s32.totalorder %s18, 1
      %p41 = por %p39, %p40
      %p43 = scmp.ne.s32.totalorder %s26, %s42
      %p44 = scmp.eq.s32.totalorder %s18, 0
      %p45 = por %p43, %p44
      %s47 = sadd.s32 %s46, 1
      %p50 = scmp.eq.s32.totalorder %s12, 1
      %p51 = scmp.ne.s32.totalorder %s46, %s48
      %p52 = scmp.eq.s32.totalorder %s12, 0
      %p53 = por %p51, %p52
      %p54 = scmp.ne.s32.totalorder %s46, %s48
      %p55 = scmp.eq.s32.totalorder %s17, 1
      %p56 = por %p54, %p55
      %p57 = scmp.ne.s32.totalorder %s48, %s49
      %p58 = scmp.eq.s32.totalorder %s17, 0
      %p59 = por %p57, %p58
      %p60 = scmp.ne.s32.totalorder %s48, %s49
      %p61 = scmp.eq.s32.totalorder %s18, 1
      %p62 = por %p60, %p61
      %p64 = scmp.ne.s32.totalorder %s49, %s63
      %p65 = scmp.eq.s32.totalorder %s18, 0
      %p66 = por %p64, %p65
      %s68 = sadd.s32 %s67, 1
      %p71 = scmp.eq.s32.totalorder %s12, 1
      %p72 = scmp.ne.s32.totalorder %s67, %s69
      %p73 = scmp.eq.s32.totalorder %s12, 0
      %p74 = por %p72, %p73
      %p75 = scmp.ne.s32.totalorder %s67, %s69
      %p76 = scmp.eq.s32.totalorder %s17, 1
      %p77 = por %p75, %p76
      %p78 = scmp.ne.s32.totalorder %s69, %s70
      %p79 = scmp.eq.s32.totalorder %s17, 0
      %p80 = por %p78, %p79
      %p81 = scmp.ne.s32.totalorder %s69, %s70
      %p82 = scmp.eq.s32.totalorder %s18, 1
      %p83 = por %p81, %p82
      %p85 = scmp.ne.s32.totalorder %s70, %s84
      %p86 = scmp.eq.s32.totalorder %s18, 0
      %p87 = por %p85, %p86
      %s88 = ssub.s32 %s12, %s19
      %p89 = scmp.eq.s32.totalorder %s88, 0
      %s91 = sadd.s32 %s90, 1
      %s92 = scalar_select %p89, %s90, %s91
      %p95 = pneg %p89
      %p96 = scmp.eq.s32.totalorder %s12, 1
      %p97 = por %p95, %p96
      %p98 = scmp.ne.s32.totalorder %s90, %s93
      %p99 = scmp.eq.s32.totalorder %s12, 0
      %p100 = por %p98, %p99
      %p101 = scmp.ne.s32.totalorder %s90, %s93
      %p102 = scmp.eq.s32.totalorder %s17, 1
      %p103 = por %p101, %p102
      %p104 = scmp.ne.s32.totalorder %s93, %s94
      %p105 = scmp.eq.s32.totalorder %s17, 0
      %p106 = por %p104, %p105
      %p107 = scmp.ne.s32.totalorder %s93, %s94
      %p108 = scmp.eq.s32.totalorder %s18, 1
      %p109 = por %p107, %p108
      %p111 = scmp.ne.s32.totalorder %s94, %s110
      %p112 = scmp.eq.s32.totalorder %s18, 0
      %p113 = por %p111, %p112
      %p114 = scmp.le.s32.totalorder 1, %s12
      %p115 = scmp.lt.s32.totalorder %s12, 3
      %p116 = pnand %p114, %p115
      %p117 = pneg %p116
      // Predicated region
      $region9: #{tpu_custom_call.1} parent=5 // pred_check
        _
      $region10: #{tpu_custom_call.1} parent=5 // pred_check_branch
        %119 = sbr.rel (%p116) target = $region12
      $region11: #{tpu_custom_call.1} parent=5 // pred_region
        %s120 = ssub.s32 %s12, 1
        // Predicated region
        $region13: #{tpu_custom_call.1} parent=11 // pred_check
          %p121 = pneg %p59
        $region14: #{tpu_custom_call.1} parent=11 // pred_check_branch
          %123 = sbr.rel (%p121) target = $region16
        $region15: #{tpu_custom_call.1} parent=11 // pred_region
          _
        $region16: #{tpu_custom_call.1} parent=11 // pred_fallthru
          _
        // Predicated region
        $region17: #{tpu_custom_call.1} parent=11 // pred_check
          %p124 = pneg %p80
        $region18: #{tpu_custom_call.1} parent=11 // pred_check_branch
          %126 = sbr.rel (%p124) target = $region20
        $region19: #{tpu_custom_call.1} parent=11 // pred_region
          _
        $region20: #{tpu_custom_call.1} parent=11 // pred_fallthru
          _
      $region12: #{tpu_custom_call.1} parent=5 // pred_fallthru
        _
      %p127 = scmp.lt.s32.totalorder %s12, 2
      // Predicated region
      $region21: #{tpu_custom_call.1} parent=5 // pred_check
        %p128 = pneg %p127
      $region22: #{tpu_custom_call.1} parent=5 // pred_check_branch
        %130 = sbr.rel (%p128) target = $region24
      $region23: #{tpu_custom_call.1} parent=5 // pred_region
        // Predicated region
        $region25: #{tpu_custom_call.1} parent=23 // pred_check
          %p131 = pneg %p32
        $region26: #{tpu_custom_call.1} parent=23 // pred_check_branch
          %133 = sbr.rel (%p131) target = $region28
        $region27: #{tpu_custom_call.1} parent=23 // pred_region
          %p134 = scmp.lt.s32.totalorder %s12, 1
          %s135 = scalar_select %p134, %s12, 1
          %s136 = smul.addr %s135, 10
          %s137 = smul.addr %s136, 4
          %s138 = scalar_lea.vmem %s0, %s137
        $region28: #{tpu_custom_call.1} parent=23 // pred_fallthru
          _
      $region24: #{tpu_custom_call.1} parent=5 // pred_fallthru
        _
      %p139 = scmp.le.s32.totalorder 1, %s12
      %p140 = scmp.lt.s32.totalorder %s12, 3
      %p141 = pnand %p139, %p140
      %p142 = pneg %p141
      // Predicated region
      $region29: #{tpu_custom_call.1} parent=5 // pred_check
        _
      $region30: #{tpu_custom_call.1} parent=5 // pred_check_branch
        %144 = sbr.rel (%p141) target = $region32
      $region31: #{tpu_custom_call.1} parent=5 // pred_region
        %s145 = ssub.s32 %s12, 1
        %p146 = scmp.lt.s32.totalorder %s17, 1
        %s147 = scalar_select %p146, %s17, 1
        %s148 = smul.addr %s147, 10
        %s149 = smul.addr %s148, 4
        %s150 = scalar_lea.vmem %s0, %s149
        %p151 = pneg %p38
        %p152 = pneg %p35
        %p153 = pneg %p59
        %p154 = pneg %p56
        %p155 = pneg %p80
        %p156 = pneg %p77
        %p157 = pneg %p106
        %p158 = pneg %p103
        %s159 = sand.u32 %s93, 1
        %s160 = scalar_lea.sflag [#allocation3], %s159
        %s161 = sand.u32 %s93, 1
        %s162 = smul.addr %s161, 8
        %s163 = scalar_lea.vmem [#allocation2], %s162
        %p164 = scmp.lt.s32.totalorder %s17, 1
        %s165 = scalar_select %p164, %s17, 1
        %s166 = smul.addr %s165, 10
        %s167 = smul.addr %s166, 4
        %s168 = scalar_lea.vmem %s0, %s167
        %v170 = vld [vmem:[%s1] sm:$0xf]
        %v171 = vld [vmem:[%s2] sm:$0xff]
        %v172 = vld [vmem:[%s168] sm:$0xff]
        %v173 = vld [vmem:[%s168 + $0x8] sm:$0xff]
        %v174 = vld [vmem:[%s168 + $0x10] sm:$0xff]
        %v175 = vld [vmem:[%s168 + $0x18] sm:$0xff]
        %v176 = vld [vmem:[%s168 + $0x20] sm:$0x33]
        %178 = vset.pattern.permute.xlu0 0
        %179 = vperm.xlu0 %178, %v171
        %v180 = vpop.permute.xlu0 %179
        %v187 = vunpack.c.l.b16 %v172
        %v188 = vunpack.c.h.b16 %v172
        %v189 = vunpack.c.l.b16 %v173
        %v190 = vunpack.c.h.b16 %v173
        %v191 = vunpack.c.l.b16 %v174
        %v192 = vunpack.c.h.b16 %v174
        %v193 = vunpack.c.l.b16 %v175
        %v194 = vunpack.c.h.b16 %v175
        %v195 = vunpack.c.l.b16 %v176
        %v196 = vunpack.c.h.b16 %v176
        %v197 = vpack.c.b16 %v189, %v187
        %v198 = vpack.c.b16 %v190, %v188
        %v199 = vpack.c.b16 %v193, %v191
        %v200 = vpack.c.b16 %v194, %v192
        %v201 = vpack.c.b16 %v195, %v195
        %v202 = vpack.c.b16 %v196, %v196
        %vm207 = vcmask 293888
        %v209 = vsel %vm207, %v170, 0
        %vm211 = vcmask 1041408
        %v213 = vsel %vm211, %v201, 0
        %v216 = vsel %vm211, %v202, 0
        %218 = vmatprep.subr.bf16.mxu0 %v198
        %219 = vmatpush1.bf16.msra.mxu0 %v197
        %220 = vmatprep.subr.bf16.mxu0 %v200
        %221 = vmatpush1.bf16.msra.mxu0 %v199
        %222 = vmatprep.subr.bf16.mxu0 %v216
        %223 = vmatpush1.bf16.msra.mxu0 %v213
        %224 = vmatprep.subr.bf16.mxu0 0
        %225 = vmatpush1.bf16.msra.mxu0 0
        %226 = vmatprep.subr.bf16.mxu0 0
        %227 = vmatpush1.bf16.msra.mxu0 0
        %228 = vmatprep.subr.bf16.mxu0 0
        %229 = vmatpush1.bf16.msra.mxu0 0
        %230 = vmatprep.subr.bf16.mxu0 0
        %231 = vmatpush1.bf16.msra.mxu0 0
        %232 = vmatprep.subr.bf16.mxu0 0
        %233 = vmatpush1.bf16.msra.mxu0 0
        %234 = vmatprep.subr.bf16.mxu0 0
        %235 = vmatpush1.bf16.msra.mxu0 0
        %236 = vmatprep.subr.bf16.mxu0 0
        %237 = vmatpush1.bf16.msra.mxu0 0
        %238 = vmatprep.subr.bf16.mxu0 0
        %239 = vmatpush1.bf16.msra.mxu0 0
        %240 = vmatprep.subr.bf16.mxu0 0
        %241 = vmatpush1.bf16.msra.mxu0 0
        %242 = vmatprep.subr.bf16.mxu0 0
        %243 = vmatpush1.bf16.msra.mxu0 0
        %244 = vmatprep.subr.bf16.mxu0 0
        %245 = vmatpush1.bf16.msra.mxu0 0
        %246 = vmatprep.subr.bf16.mxu0 0
        %247 = vmatpush1.bf16.msra.mxu0 0
        %248 = vmatprep.subr.bf16.mxu0 0
        %249 = vmatpush1.bf16.msra.mxu0 0
        %250 = vmatprep.mubr.bf16.mxu0 0
        %251 = vmatmul.mubr.bf16.gmra.mrb[0].mxu0 %v209
        %v252 = vpop.f32.mrb[0].mxu0
        %v253 = vadd.f32 %v180, %v252
        %v254 = vpop.f32.mrb[0].mxu0
        %v255 = vadd.f32 %v180, %v254
        %v256 = vpop.f32.mrb[0].mxu0
        %v257 = vpop.f32.mrb[0].mxu0
        %258 = vdwg.mxu0
        %v259 = vmax.f32 %v253, 0.0
        %v260 = vmax.f32 %v255, 0.0
        %v261 = vpack.c.bf16 %v259, %v259
        %v262 = vpack.c.bf16 %v260, %v260
        %v265 = vunpack.c.l.b16 %v261
        %v266 = vunpack.c.l.b16 %v262
        %v267 = vpack.c.b16 %v266, %v265
        %269 = vst [vmem:[%s163] sm:$0xff] %v267
        %s270 = sand.u32 %s93, 1
        %s271 = scalar_lea.sflag [#allocation3], %s270
        %s272 = sand.u32 %s93, 1
        %s273 = smul.addr %s272, 8
        %s274 = scalar_lea.vmem [#allocation2], %s273
        // Predicated region
        $region33: #{tpu_custom_call.1} parent=31 // pred_check
          %p275 = pneg %p103
        $region34: #{tpu_custom_call.1} parent=31 // pred_check_branch
          %277 = sbr.rel (%p275) target = $region36
        $region35: #{tpu_custom_call.1} parent=31 // pred_region
          %s279 = ssub.s32 128, 128
          %280 = vsyncadd %s271, %s279
          %s281 = smul.addr %s17, 2
          %s282 = smul.addr %s281, 64
          %s283 = scalar_lea.hbm %s3, %s282
          %s285 = sshll.u32 %s274, 4
          %s286 = int_to_ptr.vmem [resolvable:$true] %s285
          %288 = dma.vmem_to_hbm [thread:$0]  %s286, 128, %s283, %s271
        $region36: #{tpu_custom_call.1} parent=31 // pred_fallthru
          _
      $region32: #{tpu_custom_call.1} parent=5 // pred_fallthru
        _
      %p289 = scmp.le.s32.totalorder 2, %s12
      // Predicated region
      $region37: #{tpu_custom_call.1} parent=5 // pred_check
        %p290 = pneg %p289
      $region38: #{tpu_custom_call.1} parent=5 // pred_check_branch
        %292 = sbr.rel (%p290) target = $region40
      $region39: #{tpu_custom_call.1} parent=5 // pred_region
        %s293 = ssub.s32 %s12, 2
        // Predicated region
        $region41: #{tpu_custom_call.1} parent=39 // pred_check
          %p294 = pneg %p109
        $region42: #{tpu_custom_call.1} parent=39 // pred_check_branch
          %296 = sbr.rel (%p294) target = $region44
        $region43: #{tpu_custom_call.1} parent=39 // pred_region
          %s297 = sand.u32 %s94, 1
          %s298 = scalar_lea.sflag [#allocation3], %s297
          %s299 = sand.u32 %s94, 1
          %s300 = smul.addr %s299, 8
          %s301 = scalar_lea.vmem [#allocation2], %s300
          %302 = dma.done %s298, 128
        $region44: #{tpu_custom_call.1} parent=39 // pred_fallthru
          _
      $region40: #{tpu_custom_call.1} parent=5 // pred_fallthru
        _
    $region6: #{tpu_custom_call.1} parent=1 // loop_footer
      %s16 = sadd.s32 1, %s12
    $region7: #{tpu_custom_call.1} parent=1 // loop_footer_branch
      %11 = sbr.rel target = $region3
    $region8: #{tpu_custom_call.1} parent=1 // loop_exit
      _
    %303 = vsyncpa [#allocation3], 1
    %s304 = scalar_lea.sflag [#allocation3], 1
    %305 = vsyncpa %s304, 1

</llo_original>
